<compile_context>
chip_gen: v5e
topology: v5e:2x2
jax: 0.10.0
libtpu: 0.0.40
codegen_flags: <defaults>
</compile_context>

<pallas_src>
import jax
import jax.numpy as jnp
from jax import lax
from jax.experimental import pallas as pl
from jax.experimental.pallas import tpu as pltpu

SMOOTH_LAMDA = 10.0  # config['trainer']['smooth_lamda'] — deterministic in-script

_NEG_BIG = -1.0e30  # finite "minus infinity" for masked logits (exp -> 0, no inf-inf NaNs)


def softmax_bce_loss(predict, truth, *, smooth_lamda=SMOOTH_LAMDA, block_rows=512):
    """predict, truth: [batch, num_candidates] -> scalar f32 loss (mean BCE)."""
    B, N = predict.shape

    # Lane-align the candidate axis (pad with zeros; kernel masks padded cols).
    n_pad = ((N + 127) // 128) * 128
    pad_cols = n_pad != N
    if pad_cols:
        predict = jnp.pad(predict, ((0, 0), (0, n_pad - N)))
        truth = jnp.pad(truth, ((0, 0), (0, n_pad - N)))

    # Pick a batch tile: as large as fits comfortably in VMEM (double-buffered
    # inputs), sublane-aligned to 16 (covers f32 & bf16 packing).
    vmem_rows = max(16, (4 * 1024 * 1024) // (n_pad * 4))  # ~4MB per input block
    tb = min(block_rows, vmem_rows, B)
    if tb < B:
        tb = max(16, (tb // 16) * 16)
    num_tiles = pl.cdiv(B, tb)
    ragged = (B % tb) != 0

    def kernel(pred_ref, truth_ref, out_ref):
        x = pred_ref[...].astype(jnp.float32) * smooth_lamda
        t = truth_ref[...].astype(jnp.float32)

        if pad_cols:
            col = lax.broadcasted_iota(jnp.int32, (tb, n_pad), 1)
            valid_col = col < N
            x = jnp.where(valid_col, x, _NEG_BIG)  # exp -> 0, loss term -> 0
            t = jnp.where(valid_col, t, 0.0)

        if ragged:
            row = pl.program_id(0) * tb + lax.broadcasted_iota(jnp.int32, (tb, 1), 0)
            valid_row = row < B
            x = jnp.where(valid_row, x, 0.0)
            t = jnp.where(valid_row, t, 0.0)

        # Numerically-stable softmax pieces over the lane (candidate) axis.
        m = jnp.max(x, axis=-1, keepdims=True)
        xm = x - m
        e = jnp.exp(xm)
        s = jnp.sum(e, axis=-1, keepdims=True)
        log_s = jnp.log(s)

        # log(softmax) directly in the log domain (saves one per-element log on EUP).
        log_p = jnp.maximum(jnp.minimum(xm - log_s, 0.0), -100.0)

        # p only feeds the log(1-p) term. Exact per-row reciprocal + clamp to [.,1]
        # keeps parity with a reference e/s softmax (and avoids log(<0) NaNs).
        p = jnp.minimum(e * pl.reciprocal(s, approx=False), 1.0)
        log_1mp = jnp.maximum(jnp.log(1.0 - p), -100.0)

        loss = -(t * log_p + (1.0 - t) * log_1mp)
        if ragged:
            loss = jnp.where(valid_row, loss, 0.0)

        # Per-tile, per-column partial sums: lane-dense (1, n_pad) write.
        out_ref[...] = jnp.sum(loss, axis=0, keepdims=True)

    partial = pl.pallas_call(
        kernel,
        out_shape=jax.ShapeDtypeStruct((1, num_tiles * n_pad), jnp.float32),
        grid=(num_tiles,),
        in_specs=[
            pl.BlockSpec((tb, n_pad), lambda i: (i, 0)),
            pl.BlockSpec((tb, n_pad), lambda i: (i, 0)),
        ],
        out_specs=pl.BlockSpec((1, n_pad), lambda i: (0, i)),
        compiler_params=pltpu.CompilerParams(
            dimension_semantics=("parallel",),
        ),
    )(predict, truth)

    # Padded rows/columns contribute exactly 0; divide by the true element count.
    return jnp.sum(partial) / (B * N)


def _reference(predict, truth, smooth_lamda=SMOOTH_LAMDA):
    x = smooth_lamda * predict.astype(jnp.float32)
    p = jax.nn.softmax(x, axis=-1)
    t = truth.astype(jnp.float32)
    log_p = jnp.maximum(jnp.log(p), -100.0)
    log_1mp = jnp.maximum(jnp.log(1.0 - p), -100.0)
    return jnp.mean(-(t * log_p + (1.0 - t) * log_1mp))


if __name__ == "__main__":
    key = jax.random.PRNGKey(0)
    k1, k2, k3, k4 = jax.random.split(key, 4)

    # Case 1: 40 rows x 128 candidates, tiled in 16-row blocks -> grid=(3,)
    # (last tile is ragged, exercising the row-masking path).
    B, N = 40, 128
    # Modest logit scale: with smooth_lamda=10, large spreads push softmax p onto
    # the p == 1.0 rounding boundary where PyTorch's -100 log clamp makes an fp32
    # comparison a knife-edge; this keeps the parity check well-conditioned.
    predict = 0.25 * jax.random.normal(k1, (B, N), dtype=jnp.float32)
    truth = (jax.random.uniform(k2, (B, N)) < 0.1).astype(jnp.float32)

    loss = jax.block_until_ready(softmax_bce_loss(predict, truth, block_rows=16))
    ref = jax.block_until_ready(_reference(predict, truth))
    assert jnp.allclose(loss, ref, rtol=1e-5, atol=1e-5), (loss, ref)

    # Case 2: non-lane-aligned candidate count (N=100) -> wrapper pads to 128,
    # kernel masks the padded columns.
    B2, N2 = 8, 100
    predict2 = 0.25 * jax.random.normal(k3, (B2, N2), dtype=jnp.float32)
    truth2 = (jax.random.uniform(k4, (B2, N2)) < 0.1).astype(jnp.float32)

    loss2 = jax.block_until_ready(softmax_bce_loss(predict2, truth2))
    ref2 = jax.block_until_ready(_reference(predict2, truth2))
    assert jnp.allclose(loss2, ref2, rtol=1e-5, atol=1e-5), (loss2, ref2)

    print("KERNEL_OK")
</pallas_src>

<mosaic_0001>
module attributes {stable_mosaic.version = 11 : i64} {
  func.func @kernel(%arg0: i32, %arg1: memref<16x128xf32, #tpu.memory_space<vmem>>, %arg2: memref<16x128xf32, #tpu.memory_space<vmem>>, %arg3: memref<1x128xf32, #tpu.memory_space<vmem>>) attributes {dimension_semantics = [#tpu.dimension_semantics<parallel>], iteration_bounds = array<i64: 3>, scalar_prefetch = 0 : i64, scratch_operands = 0 : i64, tpu.core_type = #tpu.core_type<tc>, window_params = [{transform_indices = @transform_0, window_bounds = array<i64: 16, 128>}, {transform_indices = @transform_1, window_bounds = array<i64: 16, 128>}, {transform_indices = @transform_2, window_bounds = array<i64: 1, 128>}]} {
    %c0 = arith.constant 0 : index
    %c0_0 = arith.constant 0 : index
    %0 = vector.load %arg1[%c0, %c0_0] : memref<16x128xf32, #tpu.memory_space<vmem>>, vector<16x128xf32>
    %cst = arith.constant 1.000000e+01 : f32
    %1 = vector.broadcast %cst : f32 to vector<16x128xf32>
    %2 = arith.mulf %0, %1 : vector<16x128xf32>
    %c0_1 = arith.constant 0 : index
    %c0_2 = arith.constant 0 : index
    %3 = vector.load %arg2[%c0_1, %c0_2] : memref<16x128xf32, #tpu.memory_space<vmem>>, vector<16x128xf32>
    %c16_i32 = arith.constant 16 : i32
    %4 = arith.muli %arg0, %c16_i32 : i32
    %5 = tpu.iota {dimensions = array<i32: 0>} : vector<16x1xi32>
    %6 = vector.broadcast %4 : i32 to vector<16x1xi32>
    %7 = arith.addi %6, %5 : vector<16x1xi32>
    %c40_i32 = arith.constant 40 : i32
    %8 = vector.broadcast %c40_i32 : i32 to vector<16x1xi32>
    %9 = arith.cmpi slt, %7, %8 : vector<16x1xi32>
    %cst_3 = arith.constant 0.000000e+00 : f32
    %10 = vector.shape_cast %9 : vector<16x1xi1> to vector<16x1xi1>
    %11 = vector.broadcast %10 : vector<16x1xi1> to vector<16x128xi1>
    %12 = vector.broadcast %cst_3 : f32 to vector<16x128xf32>
    %13 = arith.select %11, %2, %12 : vector<16x128xi1>, vector<16x128xf32>
    %cst_4 = arith.constant 0.000000e+00 : f32
    %14 = vector.shape_cast %9 : vector<16x1xi1> to vector<16x1xi1>
    %15 = vector.broadcast %14 : vector<16x1xi1> to vector<16x128xi1>
    %16 = vector.broadcast %cst_4 : f32 to vector<16x128xf32>
    %17 = arith.select %15, %3, %16 : vector<16x128xi1>, vector<16x128xf32>
    %cst_5 = arith.constant dense<0xFF800000> : vector<16xf32>
    %18 = vector.multi_reduction <maximumf>, %13, %cst_5 [1] : vector<16x128xf32> to vector<16xf32>
    %19 = vector.shape_cast %18 : vector<16xf32> to vector<16x1xf32>
    %20 = vector.broadcast %19 : vector<16x1xf32> to vector<16x128xf32>
    %21 = arith.subf %13, %20 : vector<16x128xf32>
    %22 = math.exp %21 : vector<16x128xf32>
    %cst_6 = arith.constant dense<0.000000e+00> : vector<16xf32>
    %23 = vector.multi_reduction <add>, %22, %cst_6 [1] : vector<16x128xf32> to vector<16xf32>
    %24 = vector.shape_cast %23 : vector<16xf32> to vector<16x1xf32>
    %25 = math.log %24 : vector<16x1xf32>
    %26 = vector.broadcast %25 : vector<16x1xf32> to vector<16x128xf32>
    %27 = arith.subf %21, %26 : vector<16x128xf32>
    %cst_7 = arith.constant 0.000000e+00 : f32
    %28 = vector.broadcast %cst_7 : f32 to vector<16x128xf32>
    %29 = arith.minimumf %27, %28 : vector<16x128xf32>
    %cst_8 = arith.constant -1.000000e+02 : f32
    %30 = vector.broadcast %cst_8 : f32 to vector<16x128xf32>
    %31 = arith.maximumf %29, %30 : vector<16x128xf32>
    %32 = tpu.reciprocal %24 : vector<16x1xf32> -> vector<16x1xf32>
    %33 = vector.broadcast %32 : vector<16x1xf32> to vector<16x128xf32>
    %34 = arith.mulf %22, %33 : vector<16x128xf32>
    %cst_9 = arith.constant 1.000000e+00 : f32
    %35 = vector.broadcast %cst_9 : f32 to vector<16x128xf32>
    %36 = arith.minimumf %34, %35 : vector<16x128xf32>
    %cst_10 = arith.constant 1.000000e+00 : f32
    %37 = vector.broadcast %cst_10 : f32 to vector<16x128xf32>
    %38 = arith.subf %37, %36 : vector<16x128xf32>
    %39 = math.log %38 : vector<16x128xf32>
    %cst_11 = arith.constant -1.000000e+02 : f32
    %40 = vector.broadcast %cst_11 : f32 to vector<16x128xf32>
    %41 = arith.maximumf %39, %40 : vector<16x128xf32>
    %42 = arith.mulf %17, %31 : vector<16x128xf32>
    %cst_12 = arith.constant 1.000000e+00 : f32
    %43 = vector.broadcast %cst_12 : f32 to vector<16x128xf32>
    %44 = arith.subf %43, %17 : vector<16x128xf32>
    %45 = arith.mulf %44, %41 : vector<16x128xf32>
    %46 = arith.addf %42, %45 : vector<16x128xf32>
    %cst_13 = arith.constant 0.000000e+00 : f32
    %47 = vector.broadcast %cst_13 : f32 to vector<16x128xf32>
    %48 = arith.subf %47, %46 : vector<16x128xf32>
    %cst_14 = arith.constant 0.000000e+00 : f32
    %49 = vector.shape_cast %9 : vector<16x1xi1> to vector<16x1xi1>
    %50 = vector.broadcast %49 : vector<16x1xi1> to vector<16x128xi1>
    %51 = vector.broadcast %cst_14 : f32 to vector<16x128xf32>
    %52 = arith.select %50, %48, %51 : vector<16x128xi1>, vector<16x128xf32>
    %cst_15 = arith.constant dense<0.000000e+00> : vector<128xf32>
    %53 = vector.multi_reduction <add>, %52, %cst_15 [0] : vector<16x128xf32> to vector<128xf32>
    %54 = vector.shape_cast %53 : vector<128xf32> to vector<1x128xf32>
    %c0_16 = arith.constant 0 : index
    %c0_17 = arith.constant 0 : index
    %55 = vector.load %arg3[%c0_16, %c0_17] : memref<1x128xf32, #tpu.memory_space<vmem>>, vector<1x128xf32>
    tpu.vector_store %arg3[%c0_16, %c0_17], %54 {strides = array<i32>} : memref<1x128xf32, #tpu.memory_space<vmem>>, vector<1x128xf32>,
    return
  }
  func.func @transform_0(%arg0: i32) -> (i32, i32) {
    %c0_i32 = arith.constant 0 : i32
    %c0_i32_0 = arith.constant 0 : i32
    return %arg0, %c0_i32 : i32, i32
  }
  func.func @transform_1(%arg0: i32) -> (i32, i32) {
    %c0_i32 = arith.constant 0 : i32
    %c0_i32_0 = arith.constant 0 : i32
    return %arg0, %c0_i32 : i32, i32
  }
  func.func @transform_2(%arg0: i32) -> (i32, i32) {
    %c0_i32 = arith.constant 0 : i32
    %c0_i32_0 = arith.constant 0 : i32
    return %c0_i32, %arg0 : i32, i32
  }
}

</mosaic_0001>

<llo_original>
// kernel: tpu_custom_call.1
$region0: #{tpu_custom_call.1}
  #allocation0 [shape = 'u32[]', space=smem, size = 0x4, offset = 0x4, fixed_abs, tag = 'smem constant byte address 0x4 - core index']
  #allocation1 [shape = 'u32[72,128]{1,0:T(1,128)}', space=vmem, size = 0x9000, scoped, tag = 'internal scratch']
  %s0 = inlined_call_operand.hbm [shape: f32[40,128], index: 0, kind: input, shape index: {}]
  %s1 = inlined_call_operand.hbm [shape: f32[40,128], index: 1, kind: input, shape index: {}]
  %s2 = inlined_call_operand.hbm [shape: f32[1,384], index: 2, kind: output, shape index: {}]
  %s3 = sld [smem:[#allocation0]]
  $region49: #{tpu_custom_call.1} parent=0
    _
  %s5 = ssub.s32 1, %s3
  %s6 = scalar_select 0, %s5, %s3
  $region1: #{tpu_custom_call.1} parent=0
    #allocation2 [shape = 'u8[16384]{0}', space=vmem, size = 0x4000, scoped, tag = 'input window, operand 0']
    #allocation3 [shape = 's32[2]{0}', space=sflag, size = 0x8, scoped, tag = 'scoped memory for tpu_custom_call.1']
    #allocation4 [shape = 's32[2]{0}', space=sflag, size = 0x8, scoped, tag = 'scoped memory for tpu_custom_call.1']
    #allocation5 [shape = 'u8[16384]{0}', space=vmem, size = 0x4000, scoped, tag = 'input window, operand 1']
    #allocation6 [shape = 's32[2]{0}', space=sflag, size = 0x8, scoped, tag = 'scoped memory for tpu_custom_call.1']
    #allocation7 [shape = 'u8[1024]{0}', space=vmem, size = 0x400, scoped, tag = 'output window, operand 0']
    %7 = vsyncpa [#allocation3], 0
    %s8 = scalar_lea.sflag [#allocation3], 1
    %9 = vsyncpa %s8, 0
    %10 = vsyncpa [#allocation6], 0
    %s11 = scalar_lea.sflag [#allocation6], 1
    %12 = vsyncpa %s11, 0
    %13 = vsyncpa [#allocation4], 0
    %s14 = scalar_lea.sflag [#allocation4], 1
    %15 = vsyncpa %s14, 0
    loop: start=0, step=1, limit=5
    $region2: #{tpu_custom_call.1} parent=1 // loop_pre_header
      _
    $region3: #{tpu_custom_call.1} parent=1 // loop_header
      %s17 = sphi 0, %s21
      %p18 = scmp.ge.s32.totalorder %s17, 5
      %s27 = sphi 0, %s29
      %s30 = sphi 0, %s27
      %s31 = sphi 0, %s30
      %s47 = sphi 0, %s31
      %s53 = sphi 0, %s55
      %s56 = sphi 0, %s53
      %s57 = sphi 0, %s56
      %s73 = sphi 0, %s57
      %s79 = sphi 0, %s81
      %s82 = sphi 0, %s79
      %s83 = sphi 0, %s82
      %s99 = sphi 0, %s83
    $region4: #{tpu_custom_call.1} parent=1 // loop_header_branch
      %20 = sbr.rel (%p18) target = $region8
    $region5: #{tpu_custom_call.1} parent=1 // loop_body
      %s22 = ssub.s32 %s17, 1
      %s23 = ssub.s32 %s17, 2
      %s24 = sadd.s32 %s17, 1
      %s25 = ssub.s32 %s17, %s24
      %p26 = scmp.eq.s32.totalorder %s25, 0
      %s28 = sadd.s32 %s27, 1
      %s29 = scalar_select %p26, %s27, %s28
      %p32 = pneg %p26
      %p33 = scmp.eq.s32.totalorder %s17, 2
      %p34 = por %p32, %p33
      %p35 = scmp.ne.s32.totalorder %s27, %s30
      %p36 = scmp.eq.s32.totalorder %s17, 0
      %p37 = por %p35, %p36
      %p38 = scmp.ne.s32.totalorder %s27, %s30
      %p39 = scmp.eq.s32.totalorder %s22, 2
      %p40 = por %p38, %p39
      %p41 = scmp.ne.s32.totalorder %s30, %s31
      %p42 = scmp.eq.s32.totalorder %s22, 0
      %p43 = por %p41, %p42
      %p44 = scmp.ne.s32.totalorder %s30, %s31
      %p45 = scmp.eq.s32.totalorder %s23, 2
      %p46 = por %p44, %p45
      %p48 = scmp.ne.s32.totalorder %s31, %s47
      %p49 = scmp.eq.s32.totalorder %s23, 0
      %p50 = por %p48, %p49
      %s51 = ssub.s32 %s17, %s24
      %p52 = scmp.eq.s32.totalorder %s51, 0
      %s54 = sadd.s32 %s53, 1
      %s55 = scalar_select %p52, %s53, %s54
      %p58 = pneg %p52
      %p59 = scmp.eq.s32.totalorder %s17, 2
      %p60 = por %p58, %p59
      %p61 = scmp.ne.s32.totalorder %s53, %s56
      %p62 = scmp.eq.s32.totalorder %s17, 0
      %p63 = por %p61, %p62
      %p64 = scmp.ne.s32.totalorder %s53, %s56
      %p65 = scmp.eq.s32.totalorder %s22, 2
      %p66 = por %p64, %p65
      %p67 = scmp.ne.s32.totalorder %s56, %s57
      %p68 = scmp.eq.s32.totalorder %s22, 0
      %p69 = por %p67, %p68
      %p70 = scmp.ne.s32.totalorder %s56, %s57
      %p71 = scmp.eq.s32.totalorder %s23, 2
      %p72 = por %p70, %p71
      %p74 = scmp.ne.s32.totalorder %s57, %s73
      %p75 = scmp.eq.s32.totalorder %s23, 0
      %p76 = por %p74, %p75
      %s77 = ssub.s32 %s17, %s24
      %p78 = scmp.eq.s32.totalorder %s77, 0
      %s80 = sadd.s32 %s79, 1
      %s81 = scalar_select %p78, %s79, %s80
      %p84 = pneg %p78
      %p85 = scmp.eq.s32.totalorder %s17, 2
      %p86 = por %p84, %p85
      %p87 = scmp.ne.s32.totalorder %s79, %s82
      %p88 = scmp.eq.s32.totalorder %s17, 0
      %p89 = por %p87, %p88
      %p90 = scmp.ne.s32.totalorder %s79, %s82
      %p91 = scmp.eq.s32.totalorder %s22, 2
      %p92 = por %p90, %p91
      %p93 = scmp.ne.s32.totalorder %s82, %s83
      %p94 = scmp.eq.s32.totalorder %s22, 0
      %p95 = por %p93, %p94
      %p96 = scmp.ne.s32.totalorder %s82, %s83
      %p97 = scmp.eq.s32.totalorder %s23, 2
      %p98 = por %p96, %p97
      %p100 = scmp.ne.s32.totalorder %s83, %s99
      %p101 = scmp.eq.s32.totalorder %s23, 0
      %p102 = por %p100, %p101
      %p103 = scmp.le.s32.totalorder 1, %s17
      %p104 = scmp.lt.s32.totalorder %s17, 4
      %p105 = pnand %p103, %p104
      %p106 = pneg %p105
      // Predicated region
      $region9: #{tpu_custom_call.1} parent=5 // pred_check
        _
      $region10: #{tpu_custom_call.1} parent=5 // pred_check_branch
        %108 = sbr.rel (%p105) target = $region12
      $region11: #{tpu_custom_call.1} parent=5 // pred_region
        %s109 = ssub.s32 %s17, 1
      $region12: #{tpu_custom_call.1} parent=5 // pred_fallthru
        _
      %p110 = scmp.lt.s32.totalorder %s17, 3
      // Predicated region
      $region13: #{tpu_custom_call.1} parent=5 // pred_check
        %p111 = pneg %p110
      $region14: #{tpu_custom_call.1} parent=5 // pred_check_branch
        %113 = sbr.rel (%p111) target = $region16
      $region15: #{tpu_custom_call.1} parent=5 // pred_region
        // Predicated region
        $region17: #{tpu_custom_call.1} parent=15 // pred_check
          %p114 = pneg %p37
        $region18: #{tpu_custom_call.1} parent=15 // pred_check_branch
          %116 = sbr.rel (%p114) target = $region20
        $region19: #{tpu_custom_call.1} parent=15 // pred_region
          %s117 = sand.u32 %s27, 1
          %s118 = scalar_lea.sflag [#allocation3], %s117
          %s119 = sand.u32 %s27, 1
          %s120 = smul.addr %s119, 16
          %s121 = scalar_lea.vmem [#allocation2], %s120
          %s122 = smul.u32 2, %s17
          %s123 = ssub.s32 5, %s122
          %p124 = scmp.lt.s32.totalorder %s123, 2
          %s125 = scalar_select %p124, %s123, 2
          %s126 = smul.u32 8, %s125
          %s127 = ssub.s32 16, %s126
          %s128 = sshll.u32 %s127, 4
          %129 = vsyncadd %s118, %s128
          %p130 = scmp.ne.s32.totalorder 0, %s126
          %s131 = smul.addr %s122, 8
          %s132 = scalar_lea.hbm %s0, %s131
          %s133 = smul.u32 8, %s125
          %s134 = sshll.u32 %s132, 4
          %s135 = int_to_ptr.hbm [resolvable:$true] %s134
          %s136 = sshll.u32 %s121, 4
          %s137 = int_to_ptr.vmem [resolvable:$true] %s136
          %s138 = sshll.u32 %s133, 4
          %142 = dma.hbm_to_vmem [thread:$0]  (%p130), %s135, %s138, %s137, %s118, 128, 128, 8
        $region20: #{tpu_custom_call.1} parent=15 // pred_fallthru
          _
        // Predicated region
        $region21: #{tpu_custom_call.1} parent=15 // pred_check
          %p143 = pneg %p63
        $region22: #{tpu_custom_call.1} parent=15 // pred_check_branch
          %145 = sbr.rel (%p143) target = $region24
        $region23: #{tpu_custom_call.1} parent=15 // pred_region
          %s146 = sand.u32 %s53, 1
          %s147 = scalar_lea.sflag [#allocation6], %s146
          %s148 = sand.u32 %s53, 1
          %s149 = smul.addr %s148, 16
          %s150 = scalar_lea.vmem [#allocation5], %s149
          %s151 = smul.u32 2, %s17
          %s152 = ssub.s32 5, %s151
          %p153 = scmp.lt.s32.totalorder %s152, 2
          %s154 = scalar_select %p153, %s152, 2
          %s155 = smul.u32 8, %s154
          %s156 = ssub.s32 16, %s155
          %s157 = sshll.u32 %s156, 4
          %158 = vsyncadd %s147, %s157
          %p159 = scmp.ne.s32.totalorder 0, %s155
          %s160 = smul.addr %s151, 8
          %s161 = scalar_lea.hbm %s1, %s160
          %s162 = smul.u32 8, %s154
          %s163 = sshll.u32 %s161, 4
          %s164 = int_to_ptr.hbm [resolvable:$true] %s163
          %s165 = sshll.u32 %s150, 4
          %s166 = int_to_ptr.vmem [resolvable:$true] %s165
          %s167 = sshll.u32 %s162, 4
          %171 = dma.hbm_to_vmem [thread:$0]  (%p159), %s164, %s167, %s166, %s147, 128, 128, 8
        $region24: #{tpu_custom_call.1} parent=15 // pred_fallthru
          _
      $region16: #{tpu_custom_call.1} parent=5 // pred_fallthru
        _
      %p172 = scmp.le.s32.totalorder 1, %s17
      %p173 = scmp.lt.s32.totalorder %s17, 4
      %p174 = pnand %p172, %p173
      %p175 = pneg %p174
      // Predicated region
      $region25: #{tpu_custom_call.1} parent=5 // pred_check
        _
      $region26: #{tpu_custom_call.1} parent=5 // pred_check_branch
        %177 = sbr.rel (%p174) target = $region28
      $region27: #{tpu_custom_call.1} parent=5 // pred_region
        %s178 = ssub.s32 %s17, 1
        %s179 = sand.u32 %s30, 1
        %s180 = scalar_lea.sflag [#allocation3], %s179
        %s181 = sand.u32 %s30, 1
        %s182 = smul.addr %s181, 16
        %s183 = scalar_lea.vmem [#allocation2], %s182
        // Predicated region
        $region29: #{tpu_custom_call.1} parent=27 // pred_check
          %p184 = pneg %p43
        $region30: #{tpu_custom_call.1} parent=27 // pred_check_branch
          %186 = sbr.rel (%p184) target = $region32
        $region31: #{tpu_custom_call.1} parent=27 // pred_region
          %188 = dma.done %s180, 256
        $region32: #{tpu_custom_call.1} parent=27 // pred_fallthru
          _
        %s189 = sand.u32 %s56, 1
        %s190 = scalar_lea.sflag [#allocation6], %s189
        %s191 = sand.u32 %s56, 1
        %s192 = smul.addr %s191, 16
        %s193 = scalar_lea.vmem [#allocation5], %s192
        // Predicated region
        $region33: #{tpu_custom_call.1} parent=27 // pred_check
          %p194 = pneg %p69
        $region34: #{tpu_custom_call.1} parent=27 // pred_check_branch
          %196 = sbr.rel (%p194) target = $region36
        $region35: #{tpu_custom_call.1} parent=27 // pred_region
          %198 = dma.done %s190, 256
        $region36: #{tpu_custom_call.1} parent=27 // pred_fallthru
          _
        %s199 = sand.u32 %s30, 1
        %s200 = scalar_lea.sflag [#allocation3], %s199
        %s201 = sand.u32 %s30, 1
        %s202 = smul.addr %s201, 16
        %s203 = scalar_lea.vmem [#allocation2], %s202
        %p204 = pneg %p43
        %p205 = pneg %p40
        %s206 = sand.u32 %s56, 1
        %s207 = scalar_lea.sflag [#allocation6], %s206
        %s208 = sand.u32 %s56, 1
        %s209 = smul.addr %s208, 16
        %s210 = scalar_lea.vmem [#allocation5], %s209
        %p211 = pneg %p69
        %p212 = pneg %p66
        %p213 = pneg %p95
        %p214 = pneg %p92
        %s215 = sand.u32 %s82, 1
        %s216 = scalar_lea.sflag [#allocation4], %s215
        %s217 = sand.u32 %s82, 1
        %s218 = scalar_lea.vmem [#allocation7], %s217
        %s219 = smul.u32 2, %s22
        %s220 = ssub.s32 5, %s219
        %p221 = scmp.lt.s32.totalorder %s220, 2
        %s222 = scalar_select %p221, %s220, 2
        %s223 = smul.u32 8, %s222
        %s224 = smul.u32 2, %s22
        %s225 = ssub.s32 5, %s224
        %p226 = scmp.lt.s32.totalorder %s225, 2
        %s227 = scalar_select %p226, %s225, 2
        %s228 = smul.u32 8, %s227
        %v229 = vld [vmem:[%s183] sm:$0xff]
        %v230 = vld [vmem:[%s183 + $0x8] sm:$0xff]
        %v231 = vmul.f32 %v229, 10.0
        %v232 = vmul.f32 %v230, 10.0
        %v233 = vld [vmem:[%s193] sm:$0xff]
        %v234 = vld [vmem:[%s193 + $0x8] sm:$0xff]
        %s235 = smul.u32 %s22, 16
        %v236 = vlaneseq
        %v237 = vshrl.u32 %v236, 7
        %v238 = vadd.s32 %v237, 8
        %v239 = vstv %s235
        %v240 = vadd.s32 %v239, %v237
        %v241 = vadd.s32 %v239, %v238
        %vm242 = vcmp.lt.s32.totalorder %v240, 40
        %vm243 = vcmp.lt.s32.totalorder %v241, 40
        %v244 = vsel %vm242, 1, 0
        %v245 = vsel %vm243, 1, 0
        %vm246 = vcmp.eq.s32.totalorder %v244, 1
        %vm247 = vcmp.eq.s32.totalorder %v245, 1
        %v248 = vsel %vm246, %v231, 0.0
        %v249 = vsel %vm247, %v232, 0.0
        %v250 = vsel %vm246, %v233, 0.0
        %v251 = vsel %vm247, %v234, 0.0
        %252 = vmax.xlane.f32.xlu0 %v248
        %v253 = vpop.xlane.xlu0 %252
        %254 = vmax.xlane.f32.xlu0 %v249
        %v255 = vpop.xlane.xlu0 %254
        %v256 = vsub.f32 %v248, %v253
        %v257 = vsub.f32 %v249, %v255
        %v258 = vmul.f32 %v256, 1.442695
        %v259 = vpow.pop %v258
        %v260 = vmul.f32 %v257, 1.442695
        %v261 = vpow.pop %v260
        %262 = vadd.xlane.f32.xlu0 %v259
        %v263 = vpop.xlane.xlu0 %262
        %264 = vadd.xlane.f32.xlu0 %v261
        %v265 = vpop.xlane.xlu0 %264
        %v266 = vlog2.pop %v263
        %v267 = vmul.f32 %v266, 0.6931472
        %v268 = vlog2.pop %v265
        %v269 = vmul.f32 %v268, 0.6931472
        %v270 = vsub.f32 %v256, %v267
        %v271 = vsub.f32 %v257, %v269
        %v272 = vmin.f32 %v270, 0.0
        %v273 = vmin.f32 %v271, 0.0
        %v274 = vmax.f32 %v272, -100.0
        %v275 = vmax.f32 %v273, -100.0
        %v276 = vrcp.pop %v263
        %v277 = vmul.f32 %v263, %v276
        %v278 = vsub.f32 1.0, %v277
        %v279 = vmul.f32 %v276, %v278
        %v280 = vadd.f32 %v276, %v279
        %vm281 = vweird.f32 %v263
        %vm282 = vweird.f32 %v276
        %vm283 = vmor %vm281, %vm282
        %v284 = vsel %vm283, %v276, %v280
        %v285 = vand.u32 2147483647, %v263
        %vm286 = vcmp.eq.f32.partialorder %v285, 8.507059e+37
        %v287 = vand.u32 %v263, 2147483648
        %v288 = vor.u32 1.1754944e-38, %v287
        %v289 = vsel %vm286, %v288, %v284
        %v290 = vrcp.pop %v265
        %v291 = vmul.f32 %v265, %v290
        %v292 = vsub.f32 1.0, %v291
        %v293 = vmul.f32 %v290, %v292
        %v294 = vadd.f32 %v290, %v293
        %vm295 = vweird.f32 %v265
        %vm296 = vweird.f32 %v290
        %vm297 = vmor %vm295, %vm296
        %v298 = vsel %vm297, %v290, %v294
        %v299 = vand.u32 2147483647, %v265
        %vm300 = vcmp.eq.f32.partialorder %v299, 8.507059e+37
        %v301 = vand.u32 %v265, 2147483648
        %v302 = vor.u32 1.1754944e-38, %v301
        %v303 = vsel %vm300, %v302, %v298
        %v304 = vmul.f32 %v259, %v289
        %v305 = vmul.f32 %v261, %v303
        %v306 = vmin.f32 %v304, 1.0
        %v307 = vmin.f32 %v305, 1.0
        %v308 = vsub.f32 1.0, %v306
        %v309 = vsub.f32 1.0, %v307
        %v310 = vlog2.pop %v308
        %v311 = vmul.f32 %v310, 0.6931472
        %v312 = vlog2.pop %v309
        %v313 = vmul.f32 %v312, 0.6931472
        %v314 = vmax.f32 %v311, -100.0
        %v315 = vmax.f32 %v313, -100.0
        %v316 = vmul.f32 %v250, %v274
        %v317 = vmul.f32 %v251, %v275
        %v318 = vsub.f32 1.0, %v250
        %v319 = vsub.f32 1.0, %v251
        %v320 = vmul.f32 %v318, %v314
        %v321 = vmul.f32 %v319, %v315
        %v322 = vadd.f32 %v316, %v320
        %v323 = vadd.f32 %v317, %v321
        %v324 = vsub.f32 0.0, %v322
        %v325 = vsub.f32 0.0, %v323
        %v326 = vsel %vm246, %v324, 0.0
        %v327 = vsel %vm247, %v325, 0.0
        %v328 = vadd.f32 %v326, %v327
        %v329 = vrot.slane %v328, 4
        %v330 = vadd.f32 %v328, %v329
        %v331 = vrot.slane %v330, 2
        %v332 = vadd.f32 %v330, %v331
        %v333 = vrot.slane %v332, 1
        %v334 = vadd.f32 %v332, %v333
        %335 = vst [vmem:[%s218] sm:$0x1] %v334
        %s336 = sand.u32 %s82, 1
        %s337 = scalar_lea.sflag [#allocation4], %s336
        %s338 = sand.u32 %s82, 1
        %s339 = scalar_lea.vmem [#allocation7], %s338
        // Predicated region
        $region37: #{tpu_custom_call.1} parent=27 // pred_check
          %p340 = pneg %p92
        $region38: #{tpu_custom_call.1} parent=27 // pred_check_branch
          %342 = sbr.rel (%p340) target = $region40
        $region39: #{tpu_custom_call.1} parent=27 // pred_region
          %344 = vsyncadd %s337, 0
          %s345 = scalar_lea.hbm %s2, %s22
          %s347 = sshll.u32 %s339, 4
          %s348 = int_to_ptr.vmem [resolvable:$true] %s347
          %s349 = sshll.u32 %s345, 4
          %s350 = int_to_ptr.hbm [resolvable:$true] %s349
          %352 = dma.vmem_to_hbm [thread:$0]  %s348, 16, %s350, %s337
        $region40: #{tpu_custom_call.1} parent=27 // pred_fallthru
          _
      $region28: #{tpu_custom_call.1} parent=5 // pred_fallthru
        _
      %p353 = scmp.le.s32.totalorder 2, %s17
      // Predicated region
      $region41: #{tpu_custom_call.1} parent=5 // pred_check
        %p354 = pneg %p353
      $region42: #{tpu_custom_call.1} parent=5 // pred_check_branch
        %356 = sbr.rel (%p354) target = $region44
      $region43: #{tpu_custom_call.1} parent=5 // pred_region
        %s357 = ssub.s32 %s17, 2
        // Predicated region
        $region45: #{tpu_custom_call.1} parent=43 // pred_check
          %p358 = pneg %p98
        $region46: #{tpu_custom_call.1} parent=43 // pred_check_branch
          %360 = sbr.rel (%p358) target = $region48
        $region47: #{tpu_custom_call.1} parent=43 // pred_region
          %s361 = sand.u32 %s83, 1
          %s362 = scalar_lea.sflag [#allocation4], %s361
          %s363 = sand.u32 %s83, 1
          %s364 = scalar_lea.vmem [#allocation7], %s363
          %366 = dma.done %s362, 16
        $region48: #{tpu_custom_call.1} parent=43 // pred_fallthru
          _
      $region44: #{tpu_custom_call.1} parent=5 // pred_fallthru
        _
    $region6: #{tpu_custom_call.1} parent=1 // loop_footer
      %s21 = sadd.s32 1, %s17
    $region7: #{tpu_custom_call.1} parent=1 // loop_footer_branch
      %16 = sbr.rel target = $region3
    $region8: #{tpu_custom_call.1} parent=1 // loop_exit
      _
    %367 = vsyncpa [#allocation3], 1
    %s368 = scalar_lea.sflag [#allocation3], 1
    %369 = vsyncpa %s368, 1
    %370 = vsyncpa [#allocation6], 1
    %s371 = scalar_lea.sflag [#allocation6], 1
    %372 = vsyncpa %s371, 1
    %373 = vsyncpa [#allocation4], 1
    %s374 = scalar_lea.sflag [#allocation4], 1
    %375 = vsyncpa %s374, 1

</llo_original>
